<compile_context>
chip_gen: v6e
topology: v6e:2x2x1
jax: 0.10.0
libtpu: 0.0.40
codegen_flags: <defaults>
</compile_context>

<pallas_src>
import functools

import jax
import jax.numpy as jnp
from jax.experimental import pallas as pl
from jax.experimental.pallas import tpu as pltpu

EPS = 1e-5
LANE = 128
SUBLANE = 8
VMEM_LIMIT_BYTES = 32 * 1024 * 1024   # safe scoped-VMEM limit on v5e/v6e/v7x


def _round_up(x, m):
    return (x + m - 1) // m * m


def _tile_rows(n):
    """Node-tile size: 256 rows (good pipelining) or the whole (8-aligned) batch."""
    return 256 if n >= 256 else _round_up(max(n, 1), SUBLANE)


# ---------------------------------------------------------------------------
# Kernels
# ---------------------------------------------------------------------------

def _bn_stats_kernel(x_ref, gamma_ref, beta_ref, scale_ref, shift_ref,
                     sum_ref, sq_ref, *, n_rows):
    """Accumulate per-feature sum / sum-of-squares over node tiles; on the last
    tile fold BN into (scale, shift): scale = gamma*rsqrt(var+eps),
    shift = beta - mean*scale.  Padded rows are zero so they don't bias stats
    (we divide by the real row count)."""
    i = pl.program_id(0)

    @pl.when(i == 0)
    def _():
        sum_ref[...] = jnp.zeros_like(sum_ref)
        sq_ref[...] = jnp.zeros_like(sq_ref)

    x = x_ref[...].astype(jnp.float32)
    sum_ref[...] += jnp.sum(x, axis=0, keepdims=True)
    sq_ref[...] += jnp.sum(x * x, axis=0, keepdims=True)

    @pl.when(i == pl.num_programs(0) - 1)
    def _():
        inv_n = jnp.float32(1.0 / n_rows)
        mean = sum_ref[...] * inv_n
        var = sq_ref[...] * inv_n - mean * mean            # biased variance
        scale = gamma_ref[...] * jax.lax.rsqrt(var + jnp.float32(EPS))
        scale_ref[...] = scale
        shift_ref[...] = beta_ref[...] - mean * scale


def _tag_stats_kernel(x_ref, ids_ref, emb_ref, gamma_ref, beta_ref,
                      xaug_ref, scale_ref, shift_ref, sum_ref, sq_ref, *, n_rows):
    """Tag path: gather embedding rows via a one-hot matmul against the
    VMEM-resident table, add to the tile, emit the augmented features, and
    accumulate BN stats.  Padded rows carry id == -1 -> all-zero one-hot."""
    i = pl.program_id(0)

    @pl.when(i == 0)
    def _():
        sum_ref[...] = jnp.zeros_like(sum_ref)
        sq_ref[...] = jnp.zeros_like(sq_ref)

    x = x_ref[...].astype(jnp.float32)                      # [tile, D]
    ids = ids_ref[...]                                      # [tile, 1] int32
    t_pad = emb_ref.shape[0]
    iota = jax.lax.broadcasted_iota(jnp.int32, (x.shape[0], t_pad), 1)
    onehot = (ids == iota).astype(jnp.float32)              # [tile, T_pad]
    emb_rows = jnp.dot(onehot, emb_ref[...],
                       preferred_element_type=jnp.float32)  # row gather
    xa = x + emb_rows
    xaug_ref[...] = xa.astype(xaug_ref.dtype)

    sum_ref[...] += jnp.sum(xa, axis=0, keepdims=True)
    sq_ref[...] += jnp.sum(xa * xa, axis=0, keepdims=True)

    @pl.when(i == pl.num_programs(0) - 1)
    def _():
        inv_n = jnp.float32(1.0 / n_rows)
        mean = sum_ref[...] * inv_n
        var = sq_ref[...] * inv_n - mean * mean
        scale = gamma_ref[...] * jax.lax.rsqrt(var + jnp.float32(EPS))
        scale_ref[...] = scale
        shift_ref[...] = beta_ref[...] - mean * scale


def _bn_apply_linear_gelu_kernel(x_ref, scale_ref, shift_ref, w_ref, b_ref, o_ref):
    """Per node tile: x*scale+shift -> bf16 MXU matmul (f32 acc) -> exact GELU."""
    x = x_ref[...].astype(jnp.float32)
    xn = x * scale_ref[...] + shift_ref[...]
    y = jnp.dot(xn.astype(jnp.bfloat16), w_ref[...],
                preferred_element_type=jnp.float32) + b_ref[...]
    inv_sqrt2 = jnp.float32(0.7071067811865476)
    o_ref[...] = (0.5 * y * (1.0 + jax.lax.erf(y * inv_sqrt2))).astype(o_ref.dtype)


# ---------------------------------------------------------------------------
# pallas_call wrappers
# ---------------------------------------------------------------------------

def _stats_call(x_pad, gamma_pad, beta_pad, n_real, tile):
    n_pad, d_pad = x_pad.shape
    kernel = functools.partial(_bn_stats_kernel, n_rows=n_real)
    cost = pl.CostEstimate(flops=4 * n_pad * d_pad, transcendentals=d_pad,
                           bytes_accessed=4 * (n_pad * d_pad + 4 * d_pad))
    return pl.pallas_call(
        kernel,
        out_shape=(jax.ShapeDtypeStruct((1, d_pad), jnp.float32),
                   jax.ShapeDtypeStruct((1, d_pad), jnp.float32)),
        grid=(n_pad // tile,),
        in_specs=[
            pl.BlockSpec((tile, d_pad), lambda i: (i, 0)),
            pl.BlockSpec((1, d_pad), lambda i: (0, 0)),
            pl.BlockSpec((1, d_pad), lambda i: (0, 0)),
        ],
        out_specs=(pl.BlockSpec((1, d_pad), lambda i: (0, 0)),
                   pl.BlockSpec((1, d_pad), lambda i: (0, 0))),
        scratch_shapes=[pltpu.VMEM((1, d_pad), jnp.float32),
                        pltpu.VMEM((1, d_pad), jnp.float32)],
        compiler_params=pltpu.CompilerParams(
            dimension_semantics=("arbitrary",),           # cross-tile reduction
            vmem_limit_bytes=VMEM_LIMIT_BYTES),
        cost_estimate=cost,
    )(x_pad, gamma_pad, beta_pad)


def _tag_stats_call(x_pad, ids_pad, emb_pad, gamma_pad, beta_pad, n_real, tile):
    n_pad, d_pad = x_pad.shape
    t_pad = emb_pad.shape[0]
    kernel = functools.partial(_tag_stats_kernel, n_rows=n_real)
    cost = pl.CostEstimate(
        flops=2 * n_pad * t_pad * d_pad + 5 * n_pad * d_pad,
        transcendentals=d_pad,
        bytes_accessed=4 * (2 * n_pad * d_pad + t_pad * d_pad + n_pad + 4 * d_pad))
    return pl.pallas_call(
        kernel,
        out_shape=(jax.ShapeDtypeStruct((n_pad, d_pad), jnp.float32),
                   jax.ShapeDtypeStruct((1, d_pad), jnp.float32),
                   jax.ShapeDtypeStruct((1, d_pad), jnp.float32)),
        grid=(n_pad // tile,),
        in_specs=[
            pl.BlockSpec((tile, d_pad), lambda i: (i, 0)),
            pl.BlockSpec((tile, 1), lambda i: (i, 0)),
            pl.BlockSpec((t_pad, d_pad), lambda i: (0, 0)),   # table stays in VMEM
            pl.BlockSpec((1, d_pad), lambda i: (0, 0)),
            pl.BlockSpec((1, d_pad), lambda i: (0, 0)),
        ],
        out_specs=(pl.BlockSpec((tile, d_pad), lambda i: (i, 0)),
                   pl.BlockSpec((1, d_pad), lambda i: (0, 0)),
                   pl.BlockSpec((1, d_pad), lambda i: (0, 0))),
        scratch_shapes=[pltpu.VMEM((1, d_pad), jnp.float32),
                        pltpu.VMEM((1, d_pad), jnp.float32)],
        compiler_params=pltpu.CompilerParams(
            dimension_semantics=("arbitrary",),
            vmem_limit_bytes=VMEM_LIMIT_BYTES),
        cost_estimate=cost,
    )(x_pad, ids_pad, emb_pad, gamma_pad, beta_pad)


def _apply_call(x_pad, scale, shift, w_bf16, b_pad, tile, out_dtype):
    n_pad, d_pad = x_pad.shape
    h_pad = w_bf16.shape[1]
    cost = pl.CostEstimate(
        flops=2 * n_pad * d_pad * h_pad + 2 * n_pad * d_pad + 4 * n_pad * h_pad,
        transcendentals=n_pad * h_pad,
        bytes_accessed=(4 * n_pad * d_pad + 2 * d_pad * h_pad
                        + 4 * n_pad * h_pad + 4 * (2 * d_pad + h_pad)))
    return pl.pallas_call(
        _bn_apply_linear_gelu_kernel,
        out_shape=jax.ShapeDtypeStruct((n_pad, h_pad), out_dtype),
        grid=(n_pad // tile,),
        in_specs=[
            pl.BlockSpec((tile, d_pad), lambda i: (i, 0)),
            pl.BlockSpec((1, d_pad), lambda i: (0, 0)),
            pl.BlockSpec((1, d_pad), lambda i: (0, 0)),
            pl.BlockSpec((d_pad, h_pad), lambda i: (0, 0)),
            pl.BlockSpec((1, h_pad), lambda i: (0, 0)),
        ],
        out_specs=pl.BlockSpec((tile, h_pad), lambda i: (i, 0)),
        compiler_params=pltpu.CompilerParams(
            dimension_semantics=("parallel",),            # shards over v7x's 2 TCs
            vmem_limit_bytes=VMEM_LIMIT_BYTES),
        cost_estimate=cost,
    )(x_pad, scale, shift, w_bf16, b_pad)


# ---------------------------------------------------------------------------
# Forward
# ---------------------------------------------------------------------------

def common_embedding_forward(video_feat, tag_feat, tag_ids, params):
    """Pallas CommonEmbedding.forward.

    video_feat: [Nv, video_in_dim] f32
    tag_feat:   [Nt, tag_in_dim]   f32
    tag_ids:    [Nt]               int32 (dgl.NID of the tag src nodes)

    Returns {'video': [Nv,H], 'tag': [Nt,H], 'tag_feat_updated': [Nt, tag_in_dim]}
    where 'tag_feat_updated' mirrors the PyTorch in-place
    `srcdata['feat']['tag'] += tag_embed(NID)` side effect.
    """
    H = params["video_w"].shape[1]
    h_pad = _round_up(H, LANE)
    out_dtype = video_feat.dtype

    # NOTE: in a real model the padded/bf16 weights would be prepared once at
    # init, not re-padded per forward call.

    # ---- video path -------------------------------------------------------
    nv, dv = video_feat.shape
    dv_pad = _round_up(dv, LANE)
    tile_v = _tile_rows(nv)
    nv_pad = _round_up(nv, tile_v)

    v_x = jnp.pad(video_feat.astype(jnp.float32),
                  ((0, nv_pad - nv), (0, dv_pad - dv)))
    v_gamma = jnp.pad(params["video_gamma"], ((0, 0), (0, dv_pad - dv)))
    v_beta = jnp.pad(params["video_beta"], ((0, 0), (0, dv_pad - dv)))
    v_w = jnp.pad(params["video_w"],
                  ((0, dv_pad - dv), (0, h_pad - H))).astype(jnp.bfloat16)
    v_b = jnp.pad(params["video_b"], ((0, 0), (0, h_pad - H)))

    v_scale, v_shift = _stats_call(v_x, v_gamma, v_beta, nv, tile_v)
    v_h = _apply_call(v_x, v_scale, v_shift, v_w, v_b, tile_v, out_dtype)[:nv, :H]

    # ---- tag path ---------------------------------------------------------
    nt, dt = tag_feat.shape
    dt_pad = _round_up(dt, LANE)
    tile_t = _tile_rows(nt)
    nt_pad = _round_up(nt, tile_t)
    num_tags = params["tag_embed"].shape[0]
    t_pad = _round_up(num_tags, LANE)
    # TODO(synk): for a large tag vocabulary the full table no longer fits VMEM;
    # switch to a PrefetchScalarGridSpec / pl.Element row-gather on the table.

    t_x = jnp.pad(tag_feat.astype(jnp.float32),
                  ((0, nt_pad - nt), (0, dt_pad - dt)))
    t_ids = jnp.pad(tag_ids.astype(jnp.int32).reshape(nt, 1),
                    ((0, nt_pad - nt), (0, 0)), constant_values=-1)
    t_emb = jnp.pad(params["tag_embed"].astype(jnp.float32),
                    ((0, t_pad - num_tags), (0, dt_pad - dt)))
    t_gamma = jnp.pad(params["tag_gamma"], ((0, 0), (0, dt_pad - dt)))
    t_beta = jnp.pad(params["tag_beta"], ((0, 0), (0, dt_pad - dt)))
    t_w = jnp.pad(params["tag_w"],
                  ((0, dt_pad - dt), (0, h_pad - H))).astype(jnp.bfloat16)
    t_b = jnp.pad(params["tag_b"], ((0, 0), (0, h_pad - H)))

    t_xaug, t_scale, t_shift = _tag_stats_call(
        t_x, t_ids, t_emb, t_gamma, t_beta, nt, tile_t)
    t_h = _apply_call(t_xaug, t_scale, t_shift, t_w, t_b, tile_t, out_dtype)[:nt, :H]

    return {
        "video": v_h,
        "tag": t_h,
        "tag_feat_updated": t_xaug[:nt, :dt].astype(tag_feat.dtype),
    }


# ---------------------------------------------------------------------------
# Params / reference / demo
# ---------------------------------------------------------------------------

def init_params(key, num_tags, video_in_dim, tag_in_dim, hidden_dim):
    ks = jax.random.split(key, 3)

    def linear_init(k, d_in, d_out):
        # PyTorch Linear init: U(-1/sqrt(d_in), 1/sqrt(d_in)); weight stored [d_in, d_out].
        bound = 1.0 / jnp.sqrt(jnp.float32(d_in))
        kw, kb = jax.random.split(k)
        w = jax.random.uniform(kw, (d_in, d_out), jnp.float32, -bound, bound)
        b = jax.random.uniform(kb, (1, d_out), jnp.float32, -bound, bound)
        return w, b

    video_w, video_b = linear_init(ks[0], video_in_dim, hidden_dim)
    tag_w, tag_b = linear_init(ks[1], tag_in_dim, hidden_dim)
    tag_embed = jax.random.normal(ks[2], (num_tags, tag_in_dim), jnp.float32)

    return {
        "video_gamma": jnp.ones((1, video_in_dim), jnp.float32),
        "video_beta": jnp.zeros((1, video_in_dim), jnp.float32),
        "tag_gamma": jnp.ones((1, tag_in_dim), jnp.float32),
        "tag_beta": jnp.zeros((1, tag_in_dim), jnp.float32),
        "video_w": video_w, "video_b": video_b,
        "tag_w": tag_w, "tag_b": tag_b,
        "tag_embed": tag_embed,
    }


def _reference(video_feat, tag_feat, tag_ids, params):
    def bn_lin_gelu(x, gamma, beta, w, b):
        mean = jnp.mean(x, axis=0, keepdims=True)
        var = jnp.mean((x - mean) ** 2, axis=0, keepdims=True)
        xn = (x - mean) * jax.lax.rsqrt(var + jnp.float32(EPS)) * gamma + beta
        y = xn @ w + b
        return 0.5 * y * (1.0 + jax.lax.erf(y * jnp.float32(0.7071067811865476)))

    emb = jnp.take(params["tag_embed"], tag_ids, axis=0)
    tag_aug = tag_feat + emb
    return {
        "video": bn_lin_gelu(video_feat, params["video_gamma"], params["video_beta"],
                             params["video_w"], params["video_b"]),
        "tag": bn_lin_gelu(tag_aug, params["tag_gamma"], params["tag_beta"],
                           params["tag_w"], params["tag_b"]),
        "tag_feat_updated": tag_aug,
    }


if __name__ == "__main__":
    num_tags, video_in_dim, tag_in_dim, hidden_dim = 20, 64, 32, 32
    n_video, n_tag = 16, 16

    key = jax.random.PRNGKey(0)
    k1, k2, k3, k4 = jax.random.split(key, 4)

    params = init_params(k1, num_tags, video_in_dim, tag_in_dim, hidden_dim)
    video_feat = jax.random.normal(k2, (n_video, video_in_dim), jnp.float32)
    tag_feat = jax.random.normal(k3, (n_tag, tag_in_dim), jnp.float32)
    tag_ids = jax.random.randint(k4, (n_tag,), 0, num_tags, jnp.int32)

    fwd = jax.jit(common_embedding_forward)
    out = fwd(video_feat, tag_feat, tag_ids, params)
    jax.block_until_ready(out)

    ref = _reference(video_feat, tag_feat, tag_ids, params)
    assert out["video"].shape == (n_video, hidden_dim)
    assert out["tag"].shape == (n_tag, hidden_dim)
    # bf16 MXU inputs (f32 accumulation) -> compare against the f32 reference
    # with a correspondingly looser tolerance.
    assert jnp.allclose(out["video"], ref["video"], atol=5e-2, rtol=5e-2), \
        float(jnp.max(jnp.abs(out["video"] - ref["video"])))
    assert jnp.allclose(out["tag"], ref["tag"], atol=5e-2, rtol=5e-2), \
        float(jnp.max(jnp.abs(out["tag"] - ref["tag"])))
    assert jnp.allclose(out["tag_feat_updated"], ref["tag_feat_updated"],
                        atol=2e-2, rtol=1e-2), \
        float(jnp.max(jnp.abs(out["tag_feat_updated"] - ref["tag_feat_updated"])))

    print("KERNEL_OK")
</pallas_src>

<mosaic_0001>
module attributes {stable_mosaic.version = 11 : i64} {
  func.func @_tag_stats_kernel(%arg0: i32, %arg1: memref<16x128xf32, #tpu.memory_space<vmem>>, %arg2: memref<16x1xi32, #tpu.memory_space<vmem>>, %arg3: memref<128x128xf32, #tpu.memory_space<vmem>>, %arg4: memref<1x128xf32, #tpu.memory_space<vmem>>, %arg5: memref<1x128xf32, #tpu.memory_space<vmem>>, %arg6: memref<16x128xf32, #tpu.memory_space<vmem>>, %arg7: memref<1x128xf32, #tpu.memory_space<vmem>>, %arg8: memref<1x128xf32, #tpu.memory_space<vmem>>, %arg9: memref<1x128xf32, #tpu.memory_space<vmem>>, %arg10: memref<1x128xf32, #tpu.memory_space<vmem>>) attributes {dimension_semantics = [#tpu.dimension_semantics<arbitrary>], iteration_bounds = array<i64: 1>, scalar_prefetch = 0 : i64, scratch_operands = 2 : i64, tpu.core_type = #tpu.core_type<tc>, window_params = [{transform_indices = @transform_0, window_bounds = array<i64: 16, 128>}, {transform_indices = @transform_1, window_bounds = array<i64: 16, 1>}, {pipeline_mode = #tpu.pipeline_mode<synchronous>, transform_indices = @transform_2, window_bounds = array<i64: 128, 128>}, {pipeline_mode = #tpu.pipeline_mode<synchronous>, transform_indices = @transform_3, window_bounds = array<i64: 1, 128>}, {pipeline_mode = #tpu.pipeline_mode<synchronous>, transform_indices = @transform_4, window_bounds = array<i64: 1, 128>}, {transform_indices = @transform_5, window_bounds = array<i64: 16, 128>}, {pipeline_mode = #tpu.pipeline_mode<synchronous>, transform_indices = @transform_6, window_bounds = array<i64: 1, 128>}, {pipeline_mode = #tpu.pipeline_mode<synchronous>, transform_indices = @transform_7, window_bounds = array<i64: 1, 128>}]} {
    %c0_i32 = arith.constant 0 : i32
    %0 = arith.cmpi eq, %arg0, %c0_i32 : i32
    %1 = arith.extui %0 : i1 to i32
    %c0_i32_0 = arith.constant 0 : i32
    %2 = arith.cmpi ne, %1, %c0_i32_0 : i32
    scf.if %2 {
      %cst_20 = arith.constant 0.000000e+00 : f32
      %28 = vector.broadcast %cst_20 : f32 to vector<1x128xf32>
      %c0_21 = arith.constant 0 : index
      %c0_22 = arith.constant 0 : index
      %29 = vector.load %arg9[%c0_21, %c0_22] : memref<1x128xf32, #tpu.memory_space<vmem>>, vector<1x128xf32>
      tpu.vector_store %arg9[%c0_21, %c0_22], %28 {strides = array<i32>} : memref<1x128xf32, #tpu.memory_space<vmem>>, vector<1x128xf32>,
      %cst_23 = arith.constant 0.000000e+00 : f32
      %30 = vector.broadcast %cst_23 : f32 to vector<1x128xf32>
      %c0_24 = arith.constant 0 : index
      %c0_25 = arith.constant 0 : index
      %31 = vector.load %arg10[%c0_24, %c0_25] : memref<1x128xf32, #tpu.memory_space<vmem>>, vector<1x128xf32>
      tpu.vector_store %arg10[%c0_24, %c0_25], %30 {strides = array<i32>} : memref<1x128xf32, #tpu.memory_space<vmem>>, vector<1x128xf32>,
    } else {
    }
    %c0 = arith.constant 0 : index
    %c0_1 = arith.constant 0 : index
    %3 = vector.load %arg1[%c0, %c0_1] : memref<16x128xf32, #tpu.memory_space<vmem>>, vector<16x128xf32>
    %c0_2 = arith.constant 0 : index
    %c0_3 = arith.constant 0 : index
    %4 = vector.load %arg2[%c0_2, %c0_3] : memref<16x1xi32, #tpu.memory_space<vmem>>, vector<16x1xi32>
    %5 = tpu.iota {dimensions = array<i32: 1>} : vector<16x128xi32>
    %6 = vector.broadcast %4 : vector<16x1xi32> to vector<16x128xi32>
    %7 = arith.cmpi eq, %6, %5 : vector<16x128xi32>
    %8 = arith.extui %7 : vector<16x128xi1> to vector<16x128xi32>
    %9 = arith.sitofp %8 : vector<16x128xi32> to vector<16x128xf32>
    %c0_4 = arith.constant 0 : index
    %c0_5 = arith.constant 0 : index
    %10 = vector.load %arg3[%c0_4, %c0_5] : memref<128x128xf32, #tpu.memory_space<vmem>>, vector<128x128xf32>
    %cst = arith.constant dense<0.000000e+00> : vector<16x128xf32>
    %11 = tpu.matmul %9, %10, %cst {dimension_numbers = #tpu.dot_dimension_numbers<[1], [0], [0], [1], [0, 0, 1, 1], [], []>} : vector<16x128xf32>, vector<128x128xf32>, vector<16x128xf32> -> vector<16x128xf32>
    %12 = arith.addf %3, %11 : vector<16x128xf32>
    %c0_6 = arith.constant 0 : index
    %c0_7 = arith.constant 0 : index
    %13 = vector.load %arg6[%c0_6, %c0_7] : memref<16x128xf32, #tpu.memory_space<vmem>>, vector<16x128xf32>
    tpu.vector_store %arg6[%c0_6, %c0_7], %12 {strides = array<i32>} : memref<16x128xf32, #tpu.memory_space<vmem>>, vector<16x128xf32>,
    %c0_8 = arith.constant 0 : index
    %c0_9 = arith.constant 0 : index
    %14 = vector.load %arg9[%c0_8, %c0_9] : memref<1x128xf32, #tpu.memory_space<vmem>>, vector<1x128xf32>
    %cst_10 = arith.constant dense<0.000000e+00> : vector<128xf32>
    %15 = vector.multi_reduction <add>, %12, %cst_10 [0] : vector<16x128xf32> to vector<128xf32>
    %16 = vector.shape_cast %15 : vector<128xf32> to vector<1x128xf32>
    %17 = arith.addf %14, %16 : vector<1x128xf32>
    %c0_11 = arith.constant 0 : index
    %c0_12 = arith.constant 0 : index
    %18 = vector.load %arg9[%c0_11, %c0_12] : memref<1x128xf32, #tpu.memory_space<vmem>>, vector<1x128xf32>
    tpu.vector_store %arg9[%c0_11, %c0_12], %17 {strides = array<i32>} : memref<1x128xf32, #tpu.memory_space<vmem>>, vector<1x128xf32>,
    %c0_13 = arith.constant 0 : index
    %c0_14 = arith.constant 0 : index
    %19 = vector.load %arg10[%c0_13, %c0_14] : memref<1x128xf32, #tpu.memory_space<vmem>>, vector<1x128xf32>
    %20 = arith.mulf %12, %12 : vector<16x128xf32>
    %cst_15 = arith.constant dense<0.000000e+00> : vector<128xf32>
    %21 = vector.multi_reduction <add>, %20, %cst_15 [0] : vector<16x128xf32> to vector<128xf32>
    %22 = vector.shape_cast %21 : vector<128xf32> to vector<1x128xf32>
    %23 = arith.addf %19, %22 : vector<1x128xf32>
    %c0_16 = arith.constant 0 : index
    %c0_17 = arith.constant 0 : index
    %24 = vector.load %arg10[%c0_16, %c0_17] : memref<1x128xf32, #tpu.memory_space<vmem>>, vector<1x128xf32>
    tpu.vector_store %arg10[%c0_16, %c0_17], %23 {strides = array<i32>} : memref<1x128xf32, #tpu.memory_space<vmem>>, vector<1x128xf32>,
    %c0_i32_18 = arith.constant 0 : i32
    %25 = arith.cmpi eq, %arg0, %c0_i32_18 : i32
    %26 = arith.extui %25 : i1 to i32
    %c0_i32_19 = arith.constant 0 : i32
    %27 = arith.cmpi ne, %26, %c0_i32_19 : i32
    scf.if %27 {
      %c0_20 = arith.constant 0 : index
      %c0_21 = arith.constant 0 : index
      %28 = vector.load %arg9[%c0_20, %c0_21] : memref<1x128xf32, #tpu.memory_space<vmem>>, vector<1x128xf32>
      %cst_22 = arith.constant 6.250000e-02 : f32
      %29 = vector.broadcast %cst_22 : f32 to vector<1x128xf32>
      %30 = arith.mulf %28, %29 : vector<1x128xf32>
      %c0_23 = arith.constant 0 : index
      %c0_24 = arith.constant 0 : index
      %31 = vector.load %arg10[%c0_23, %c0_24] : memref<1x128xf32, #tpu.memory_space<vmem>>, vector<1x128xf32>
      %cst_25 = arith.constant 6.250000e-02 : f32
      %32 = vector.broadcast %cst_25 : f32 to vector<1x128xf32>
      %33 = arith.mulf %31, %32 : vector<1x128xf32>
      %34 = arith.mulf %30, %30 : vector<1x128xf32>
      %35 = arith.subf %33, %34 : vector<1x128xf32>
      %c0_26 = arith.constant 0 : index
      %c0_27 = arith.constant 0 : index
      %36 = vector.load %arg4[%c0_26, %c0_27] : memref<1x128xf32, #tpu.memory_space<vmem>>, vector<1x128xf32>
      %cst_28 = arith.constant 9.99999974E-6 : f32
      %37 = vector.broadcast %cst_28 : f32 to vector<1x128xf32>
      %38 = arith.addf %35, %37 : vector<1x128xf32>
      %39 = math.rsqrt %38 : vector<1x128xf32>
      %40 = arith.mulf %36, %39 : vector<1x128xf32>
      %c0_29 = arith.constant 0 : index
      %c0_30 = arith.constant 0 : index
      %41 = vector.load %arg7[%c0_29, %c0_30] : memref<1x128xf32, #tpu.memory_space<vmem>>, vector<1x128xf32>
      tpu.vector_store %arg7[%c0_29, %c0_30], %40 {strides = array<i32>} : memref<1x128xf32, #tpu.memory_space<vmem>>, vector<1x128xf32>,
      %c0_31 = arith.constant 0 : index
      %c0_32 = arith.constant 0 : index
      %42 = vector.load %arg5[%c0_31, %c0_32] : memref<1x128xf32, #tpu.memory_space<vmem>>, vector<1x128xf32>
      %43 = arith.mulf %30, %40 : vector<1x128xf32>
      %44 = arith.subf %42, %43 : vector<1x128xf32>
      %c0_33 = arith.constant 0 : index
      %c0_34 = arith.constant 0 : index
      %45 = vector.load %arg8[%c0_33, %c0_34] : memref<1x128xf32, #tpu.memory_space<vmem>>, vector<1x128xf32>
      tpu.vector_store %arg8[%c0_33, %c0_34], %44 {strides = array<i32>} : memref<1x128xf32, #tpu.memory_space<vmem>>, vector<1x128xf32>,
    } else {
    }
    return
  }
  func.func @transform_0(%arg0: i32) -> (i32, i32) {
    %c0_i32 = arith.constant 0 : i32
    %c0_i32_0 = arith.constant 0 : i32
    return %arg0, %c0_i32 : i32, i32
  }
  func.func @transform_1(%arg0: i32) -> (i32, i32) {
    %c0_i32 = arith.constant 0 : i32
    %c0_i32_0 = arith.constant 0 : i32
    return %arg0, %c0_i32 : i32, i32
  }
  func.func @transform_2(%arg0: i32) -> (i32, i32) {
    %c0_i32 = arith.constant 0 : i32
    %c0_i32_0 = arith.constant 0 : i32
    %c0_i32_1 = arith.constant 0 : i32
    return %c0_i32, %c0_i32_0 : i32, i32
  }
  func.func @transform_3(%arg0: i32) -> (i32, i32) {
    %c0_i32 = arith.constant 0 : i32
    %c0_i32_0 = arith.constant 0 : i32
    %c0_i32_1 = arith.constant 0 : i32
    return %c0_i32, %c0_i32_0 : i32, i32
  }
  func.func @transform_4(%arg0: i32) -> (i32, i32) {
    %c0_i32 = arith.constant 0 : i32
    %c0_i32_0 = arith.constant 0 : i32
    %c0_i32_1 = arith.constant 0 : i32
    return %c0_i32, %c0_i32_0 : i32, i32
  }
  func.func @transform_5(%arg0: i32) -> (i32, i32) {
    %c0_i32 = arith.constant 0 : i32
    %c0_i32_0 = arith.constant 0 : i32
    return %arg0, %c0_i32 : i32, i32
  }
  func.func @transform_6(%arg0: i32) -> (i32, i32) {
    %c0_i32 = arith.constant 0 : i32
    %c0_i32_0 = arith.constant 0 : i32
    %c0_i32_1 = arith.constant 0 : i32
    return %c0_i32, %c0_i32_0 : i32, i32
  }
  func.func @transform_7(%arg0: i32) -> (i32, i32) {
    %c0_i32 = arith.constant 0 : i32
    %c0_i32_0 = arith.constant 0 : i32
    %c0_i32_1 = arith.constant 0 : i32
    return %c0_i32, %c0_i32_0 : i32, i32
  }
}

module attributes {stable_mosaic.version = 11 : i64} {
  func.func @_bn_apply_linear_gelu_kernel(%arg0: i32, %arg1: memref<16x128xf32, #tpu.memory_space<vmem>>, %arg2: memref<1x128xf32, #tpu.memory_space<vmem>>, %arg3: memref<1x128xf32, #tpu.memory_space<vmem>>, %arg4: memref<128x128xbf16, #tpu.memory_space<vmem>>, %arg5: memref<1x128xf32, #tpu.memory_space<vmem>>, %arg6: memref<16x128xf32, #tpu.memory_space<vmem>>) attributes {dimension_semantics = [#tpu.dimension_semantics<parallel>], iteration_bounds = array<i64: 1>, scalar_prefetch = 0 : i64, scratch_operands = 0 : i64, tpu.core_type = #tpu.core_type<tc>, window_params = [{transform_indices = @transform_0, window_bounds = array<i64: 16, 128>}, {pipeline_mode = #tpu.pipeline_mode<synchronous>, transform_indices = @transform_1, window_bounds = array<i64: 1, 128>}, {pipeline_mode = #tpu.pipeline_mode<synchronous>, transform_indices = @transform_2, window_bounds = array<i64: 1, 128>}, {pipeline_mode = #tpu.pipeline_mode<synchronous>, transform_indices = @transform_3, window_bounds = array<i64: 128, 128>}, {pipeline_mode = #tpu.pipeline_mode<synchronous>, transform_indices = @transform_4, window_bounds = array<i64: 1, 128>}, {transform_indices = @transform_5, window_bounds = array<i64: 16, 128>}]} {
    %c0 = arith.constant 0 : index
    %c0_0 = arith.constant 0 : index
    %0 = vector.load %arg1[%c0, %c0_0] : memref<16x128xf32, #tpu.memory_space<vmem>>, vector<16x128xf32>
    %c0_1 = arith.constant 0 : index
    %c0_2 = arith.constant 0 : index
    %1 = vector.load %arg2[%c0_1, %c0_2] : memref<1x128xf32, #tpu.memory_space<vmem>>, vector<1x128xf32>
    %2 = vector.broadcast %1 : vector<1x128xf32> to vector<16x128xf32>
    %3 = arith.mulf %0, %2 : vector<16x128xf32>
    %c0_3 = arith.constant 0 : index
    %c0_4 = arith.constant 0 : index
    %4 = vector.load %arg3[%c0_3, %c0_4] : memref<1x128xf32, #tpu.memory_space<vmem>>, vector<1x128xf32>
    %5 = vector.broadcast %4 : vector<1x128xf32> to vector<16x128xf32>
    %6 = arith.addf %3, %5 : vector<16x128xf32>
    %7 = arith.truncf %6 : vector<16x128xf32> to vector<16x128xbf16>
    %c0_5 = arith.constant 0 : index
    %c0_6 = arith.constant 0 : index
    %8 = vector.load %arg4[%c0_5, %c0_6] : memref<128x128xbf16, #tpu.memory_space<vmem>>, vector<128x128xbf16>
    %cst = arith.constant dense<0.000000e+00> : vector<16x128xf32>
    %9 = tpu.matmul %7, %8, %cst {dimension_numbers = #tpu.dot_dimension_numbers<[1], [0], [0], [1], [0, 0, 1, 1], [], []>} : vector<16x128xbf16>, vector<128x128xbf16>, vector<16x128xf32> -> vector<16x128xf32>
    %c0_7 = arith.constant 0 : index
    %c0_8 = arith.constant 0 : index
    %10 = vector.load %arg5[%c0_7, %c0_8] : memref<1x128xf32, #tpu.memory_space<vmem>>, vector<1x128xf32>
    %11 = vector.broadcast %10 : vector<1x128xf32> to vector<16x128xf32>
    %12 = arith.addf %9, %11 : vector<16x128xf32>
    %cst_9 = arith.constant 5.000000e-01 : f32
    %13 = vector.broadcast %cst_9 : f32 to vector<16x128xf32>
    %14 = arith.mulf %13, %12 : vector<16x128xf32>
    %cst_10 = arith.constant 0.707106769 : f32
    %15 = vector.broadcast %cst_10 : f32 to vector<16x128xf32>
    %16 = arith.mulf %12, %15 : vector<16x128xf32>
    %17 = math.erf %16 : vector<16x128xf32>
    %cst_11 = arith.constant 1.000000e+00 : f32
    %18 = vector.broadcast %cst_11 : f32 to vector<16x128xf32>
    %19 = arith.addf %18, %17 : vector<16x128xf32>
    %20 = arith.mulf %14, %19 : vector<16x128xf32>
    %c0_12 = arith.constant 0 : index
    %c0_13 = arith.constant 0 : index
    %21 = vector.load %arg6[%c0_12, %c0_13] : memref<16x128xf32, #tpu.memory_space<vmem>>, vector<16x128xf32>
    tpu.vector_store %arg6[%c0_12, %c0_13], %20 {strides = array<i32>} : memref<16x128xf32, #tpu.memory_space<vmem>>, vector<16x128xf32>,
    return
  }
  func.func @transform_0(%arg0: i32) -> (i32, i32) {
    %c0_i32 = arith.constant 0 : i32
    %c0_i32_0 = arith.constant 0 : i32
    return %arg0, %c0_i32 : i32, i32
  }
  func.func @transform_1(%arg0: i32) -> (i32, i32) {
    %c0_i32 = arith.constant 0 : i32
    %c0_i32_0 = arith.constant 0 : i32
    %c0_i32_1 = arith.constant 0 : i32
    return %c0_i32, %c0_i32_0 : i32, i32
  }
  func.func @transform_2(%arg0: i32) -> (i32, i32) {
    %c0_i32 = arith.constant 0 : i32
    %c0_i32_0 = arith.constant 0 : i32
    %c0_i32_1 = arith.constant 0 : i32
    return %c0_i32, %c0_i32_0 : i32, i32
  }
  func.func @transform_3(%arg0: i32) -> (i32, i32) {
    %c0_i32 = arith.constant 0 : i32
    %c0_i32_0 = arith.constant 0 : i32
    %c0_i32_1 = arith.constant 0 : i32
    return %c0_i32, %c0_i32_0 : i32, i32
  }
  func.func @transform_4(%arg0: i32) -> (i32, i32) {
    %c0_i32 = arith.constant 0 : i32
    %c0_i32_0 = arith.constant 0 : i32
    %c0_i32_1 = arith.constant 0 : i32
    return %c0_i32, %c0_i32_0 : i32, i32
  }
  func.func @transform_5(%arg0: i32) -> (i32, i32) {
    %c0_i32 = arith.constant 0 : i32
    %c0_i32_0 = arith.constant 0 : i32
    return %arg0, %c0_i32 : i32, i32
  }
}

module attributes {stable_mosaic.version = 11 : i64} {
  func.func @_bn_stats_kernel(%arg0: i32, %arg1: memref<16x128xf32, #tpu.memory_space<vmem>>, %arg2: memref<1x128xf32, #tpu.memory_space<vmem>>, %arg3: memref<1x128xf32, #tpu.memory_space<vmem>>, %arg4: memref<1x128xf32, #tpu.memory_space<vmem>>, %arg5: memref<1x128xf32, #tpu.memory_space<vmem>>, %arg6: memref<1x128xf32, #tpu.memory_space<vmem>>, %arg7: memref<1x128xf32, #tpu.memory_space<vmem>>) attributes {dimension_semantics = [#tpu.dimension_semantics<arbitrary>], iteration_bounds = array<i64: 1>, scalar_prefetch = 0 : i64, scratch_operands = 2 : i64, tpu.core_type = #tpu.core_type<tc>, window_params = [{transform_indices = @transform_0, window_bounds = array<i64: 16, 128>}, {pipeline_mode = #tpu.pipeline_mode<synchronous>, transform_indices = @transform_1, window_bounds = array<i64: 1, 128>}, {pipeline_mode = #tpu.pipeline_mode<synchronous>, transform_indices = @transform_2, window_bounds = array<i64: 1, 128>}, {pipeline_mode = #tpu.pipeline_mode<synchronous>, transform_indices = @transform_3, window_bounds = array<i64: 1, 128>}, {pipeline_mode = #tpu.pipeline_mode<synchronous>, transform_indices = @transform_4, window_bounds = array<i64: 1, 128>}]} {
    %c0_i32 = arith.constant 0 : i32
    %0 = arith.cmpi eq, %arg0, %c0_i32 : i32
    %1 = arith.extui %0 : i1 to i32
    %c0_i32_0 = arith.constant 0 : i32
    %2 = arith.cmpi ne, %1, %c0_i32_0 : i32
    scf.if %2 {
      %cst_13 = arith.constant 0.000000e+00 : f32
      %18 = vector.broadcast %cst_13 : f32 to vector<1x128xf32>
      %c0_14 = arith.constant 0 : index
      %c0_15 = arith.constant 0 : index
      %19 = vector.load %arg6[%c0_14, %c0_15] : memref<1x128xf32, #tpu.memory_space<vmem>>, vector<1x128xf32>
      tpu.vector_store %arg6[%c0_14, %c0_15], %18 {strides = array<i32>} : memref<1x128xf32, #tpu.memory_space<vmem>>, vector<1x128xf32>,
      %cst_16 = arith.constant 0.000000e+00 : f32
      %20 = vector.broadcast %cst_16 : f32 to vector<1x128xf32>
      %c0_17 = arith.constant 0 : index
      %c0_18 = arith.constant 0 : index
      %21 = vector.load %arg7[%c0_17, %c0_18] : memref<1x128xf32, #tpu.memory_space<vmem>>, vector<1x128xf32>
      tpu.vector_store %arg7[%c0_17, %c0_18], %20 {strides = array<i32>} : memref<1x128xf32, #tpu.memory_space<vmem>>, vector<1x128xf32>,
    } else {
    }
    %c0 = arith.constant 0 : index
    %c0_1 = arith.constant 0 : index
    %3 = vector.load %arg1[%c0, %c0_1] : memref<16x128xf32, #tpu.memory_space<vmem>>, vector<16x128xf32>
    %c0_2 = arith.constant 0 : index
    %c0_3 = arith.constant 0 : index
    %4 = vector.load %arg6[%c0_2, %c0_3] : memref<1x128xf32, #tpu.memory_space<vmem>>, vector<1x128xf32>
    %cst = arith.constant dense<0.000000e+00> : vector<128xf32>
    %5 = vector.multi_reduction <add>, %3, %cst [0] : vector<16x128xf32> to vector<128xf32>
    %6 = vector.shape_cast %5 : vector<128xf32> to vector<1x128xf32>
    %7 = arith.addf %4, %6 : vector<1x128xf32>
    %c0_4 = arith.constant 0 : index
    %c0_5 = arith.constant 0 : index
    %8 = vector.load %arg6[%c0_4, %c0_5] : memref<1x128xf32, #tpu.memory_space<vmem>>, vector<1x128xf32>
    tpu.vector_store %arg6[%c0_4, %c0_5], %7 {strides = array<i32>} : memref<1x128xf32, #tpu.memory_space<vmem>>, vector<1x128xf32>,
    %c0_6 = arith.constant 0 : index
    %c0_7 = arith.constant 0 : index
    %9 = vector.load %arg7[%c0_6, %c0_7] : memref<1x128xf32, #tpu.memory_space<vmem>>, vector<1x128xf32>
    %10 = arith.mulf %3, %3 : vector<16x128xf32>
    %cst_8 = arith.constant dense<0.000000e+00> : vector<128xf32>
    %11 = vector.multi_reduction <add>, %10, %cst_8 [0] : vector<16x128xf32> to vector<128xf32>
    %12 = vector.shape_cast %11 : vector<128xf32> to vector<1x128xf32>
    %13 = arith.addf %9, %12 : vector<1x128xf32>
    %c0_9 = arith.constant 0 : index
    %c0_10 = arith.constant 0 : index
    %14 = vector.load %arg7[%c0_9, %c0_10] : memref<1x128xf32, #tpu.memory_space<vmem>>, vector<1x128xf32>
    tpu.vector_store %arg7[%c0_9, %c0_10], %13 {strides = array<i32>} : memref<1x128xf32, #tpu.memory_space<vmem>>, vector<1x128xf32>,
    %c0_i32_11 = arith.constant 0 : i32
    %15 = arith.cmpi eq, %arg0, %c0_i32_11 : i32
    %16 = arith.extui %15 : i1 to i32
    %c0_i32_12 = arith.constant 0 : i32
    %17 = arith.cmpi ne, %16, %c0_i32_12 : i32
    scf.if %17 {
      %c0_13 = arith.constant 0 : index
      %c0_14 = arith.constant 0 : index
      %18 = vector.load %arg6[%c0_13, %c0_14] : memref<1x128xf32, #tpu.memory_space<vmem>>, vector<1x128xf32>
      %cst_15 = arith.constant 6.250000e-02 : f32
      %19 = vector.broadcast %cst_15 : f32 to vector<1x128xf32>
      %20 = arith.mulf %18, %19 : vector<1x128xf32>
      %c0_16 = arith.constant 0 : index
      %c0_17 = arith.constant 0 : index
      %21 = vector.load %arg7[%c0_16, %c0_17] : memref<1x128xf32, #tpu.memory_space<vmem>>, vector<1x128xf32>
      %cst_18 = arith.constant 6.250000e-02 : f32
      %22 = vector.broadcast %cst_18 : f32 to vector<1x128xf32>
      %23 = arith.mulf %21, %22 : vector<1x128xf32>
      %24 = arith.mulf %20, %20 : vector<1x128xf32>
      %25 = arith.subf %23, %24 : vector<1x128xf32>
      %c0_19 = arith.constant 0 : index
      %c0_20 = arith.constant 0 : index
      %26 = vector.load %arg2[%c0_19, %c0_20] : memref<1x128xf32, #tpu.memory_space<vmem>>, vector<1x128xf32>
      %cst_21 = arith.constant 9.99999974E-6 : f32
      %27 = vector.broadcast %cst_21 : f32 to vector<1x128xf32>
      %28 = arith.addf %25, %27 : vector<1x128xf32>
      %29 = math.rsqrt %28 : vector<1x128xf32>
      %30 = arith.mulf %26, %29 : vector<1x128xf32>
      %c0_22 = arith.constant 0 : index
      %c0_23 = arith.constant 0 : index
      %31 = vector.load %arg4[%c0_22, %c0_23] : memref<1x128xf32, #tpu.memory_space<vmem>>, vector<1x128xf32>
      tpu.vector_store %arg4[%c0_22, %c0_23], %30 {strides = array<i32>} : memref<1x128xf32, #tpu.memory_space<vmem>>, vector<1x128xf32>,
      %c0_24 = arith.constant 0 : index
      %c0_25 = arith.constant 0 : index
      %32 = vector.load %arg3[%c0_24, %c0_25] : memref<1x128xf32, #tpu.memory_space<vmem>>, vector<1x128xf32>
      %33 = arith.mulf %20, %30 : vector<1x128xf32>
      %34 = arith.subf %32, %33 : vector<1x128xf32>
      %c0_26 = arith.constant 0 : index
      %c0_27 = arith.constant 0 : index
      %35 = vector.load %arg5[%c0_26, %c0_27] : memref<1x128xf32, #tpu.memory_space<vmem>>, vector<1x128xf32>
      tpu.vector_store %arg5[%c0_26, %c0_27], %34 {strides = array<i32>} : memref<1x128xf32, #tpu.memory_space<vmem>>, vector<1x128xf32>,
    } else {
    }
    return
  }
  func.func @transform_0(%arg0: i32) -> (i32, i32) {
    %c0_i32 = arith.constant 0 : i32
    %c0_i32_0 = arith.constant 0 : i32
    return %arg0, %c0_i32 : i32, i32
  }
  func.func @transform_1(%arg0: i32) -> (i32, i32) {
    %c0_i32 = arith.constant 0 : i32
    %c0_i32_0 = arith.constant 0 : i32
    %c0_i32_1 = arith.constant 0 : i32
    return %c0_i32, %c0_i32_0 : i32, i32
  }
  func.func @transform_2(%arg0: i32) -> (i32, i32) {
    %c0_i32 = arith.constant 0 : i32
    %c0_i32_0 = arith.constant 0 : i32
    %c0_i32_1 = arith.constant 0 : i32
    return %c0_i32, %c0_i32_0 : i32, i32
  }
  func.func @transform_3(%arg0: i32) -> (i32, i32) {
    %c0_i32 = arith.constant 0 : i32
    %c0_i32_0 = arith.constant 0 : i32
    %c0_i32_1 = arith.constant 0 : i32
    return %c0_i32, %c0_i32_0 : i32, i32
  }
  func.func @transform_4(%arg0: i32) -> (i32, i32) {
    %c0_i32 = arith.constant 0 : i32
    %c0_i32_0 = arith.constant 0 : i32
    %c0_i32_1 = arith.constant 0 : i32
    return %c0_i32, %c0_i32_0 : i32, i32
  }
}

</mosaic_0001>

<llo_original>
// kernel: common_embedding_forward.4
$region0: #{common_embedding_forward.4}
  #allocation0 [shape = 'u32[]', space=smem, size = 0x4, offset = 0x4, fixed_abs, tag = 'smem constant byte address 0x4 - core index']
  #allocation1 [shape = 'u32[144,128]{1,0:T(1,128)}', space=vmem, size = 0x12000, scoped, tag = 'internal scratch']
  #allocation2 [shape = 'f32[1,128]{1,0:T(1,128)}', space=vmem, size = 0x200, scoped, tag = 'scratch operand']
  #allocation3 [shape = 'f32[1,128]{1,0:T(1,128)}', space=vmem, size = 0x200, scoped, tag = 'scratch operand']
  %s0 = inlined_call_operand.vmem [shape: f32[16,128], index: 0, kind: input, shape index: {}]
  %s1 = inlined_call_operand.vmem [shape: f32[1,128], index: 1, kind: input, shape index: {}]
  %s2 = inlined_call_operand.vmem [shape: f32[1,128], index: 2, kind: input, shape index: {}]
  %s3 = inlined_call_operand.vmem [shape: f32[1,128], index: 3, kind: output, shape index: {0}]
  %s4 = inlined_call_operand.vmem [shape: f32[1,128], index: 4, kind: output, shape index: {1}]
  %5 = xla_tuple %s3, %s4
  %s6 = sld [smem:[#allocation0]]
  $region38: #{common_embedding_forward.4} parent=0
    _
  %s8 = ssub.s32 1, %s6
  %s9 = scalar_select 0, %s8, %s6
  // Predicated region
  $region2: #{common_embedding_forward.4} parent=0 // pred_check
    _
  $region3: #{common_embedding_forward.4} parent=0 // pred_check_branch
    %11 = sbr.rel (0) target = $region5
  $region4: #{common_embedding_forward.4} parent=0 // pred_region
    _
  $region5: #{common_embedding_forward.4} parent=0 // pred_fallthru
    _
  // Predicated region
  $region6: #{common_embedding_forward.4} parent=0 // pred_check
    _
  $region7: #{common_embedding_forward.4} parent=0 // pred_check_branch
    %13 = sbr.rel (0) target = $region9
  $region8: #{common_embedding_forward.4} parent=0 // pred_region
    _
  $region9: #{common_embedding_forward.4} parent=0 // pred_fallthru
    _
  // Predicated region
  $region10: #{common_embedding_forward.4} parent=0 // pred_check
    _
  $region11: #{common_embedding_forward.4} parent=0 // pred_check_branch
    %15 = sbr.rel (0) target = $region13
  $region12: #{common_embedding_forward.4} parent=0 // pred_region
    _
  $region13: #{common_embedding_forward.4} parent=0 // pred_fallthru
    _
  %p16 = scmp.eq.s32.totalorder 0, 0
  // Predicated region
  $region14: #{common_embedding_forward.4} parent=0 // pred_check
    %p17 = pneg %p16
  $region15: #{common_embedding_forward.4} parent=0 // pred_check_branch
    %19 = sbr.rel (%p17) target = $region17
  $region16: #{common_embedding_forward.4} parent=0 // pred_region
    %20 = vst [vmem:[#allocation2] sm:$0x1] 0.0
    %21 = vst [vmem:[#allocation3] sm:$0x1] 0.0
  $region17: #{common_embedding_forward.4} parent=0 // pred_fallthru
    _
  %v22 = vld [vmem:[%s0] sm:$0xff]
  %v23 = vld [vmem:[%s0 + $0x8] sm:$0xff]
  %v24 = vld [vmem:[#allocation2] sm:$0x1]
  %v25 = vadd.f32 %v22, %v23
  %v26 = vrot.slane %v25, 4
  %v27 = vadd.f32 %v25, %v26
  %v28 = vrot.slane %v27, 2
  %v29 = vadd.f32 %v27, %v28
  %v30 = vrot.slane %v29, 1
  %v31 = vadd.f32 %v29, %v30
  %v32 = vadd.f32 %v24, %v31
  %33 = vst [vmem:[#allocation2] sm:$0x1] %v32
  %v34 = vld [vmem:[#allocation3] sm:$0x1]
  %v35 = vmul.f32 %v22, %v22
  %v36 = vmul.f32 %v23, %v23
  %v37 = vadd.f32 %v35, %v36
  %v38 = vrot.slane %v37, 4
  %v39 = vadd.f32 %v37, %v38
  %v40 = vrot.slane %v39, 2
  %v41 = vadd.f32 %v39, %v40
  %v42 = vrot.slane %v41, 1
  %v43 = vadd.f32 %v41, %v42
  %v44 = vadd.f32 %v34, %v43
  %45 = vst [vmem:[#allocation3] sm:$0x1] %v44
  // Predicated region
  $region18: #{common_embedding_forward.4} parent=0 // pred_check
    %p46 = pneg %p16
  $region19: #{common_embedding_forward.4} parent=0 // pred_check_branch
    %48 = sbr.rel (%p46) target = $region21
  $region20: #{common_embedding_forward.4} parent=0 // pred_region
    %v49 = vld [vmem:[#allocation2] sm:$0x1]
    %v50 = vmul.f32 %v49, 0.0625
    %v51 = vld [vmem:[#allocation3] sm:$0x1]
    %v52 = vmul.f32 %v51, 0.0625
    %v53 = vmul.f32 %v50, %v50
    %v54 = vsub.f32 %v52, %v53
    %v55 = vld [vmem:[%s1] sm:$0x1]
    %v56 = vadd.f32 %v54, 1e-05
    %v57 = vrsqrt.pop %v56
    %v58 = vmul.f32 %v55, %v57
    %59 = vst [vmem:[%s3] sm:$0x1] %v58
    %v60 = vld [vmem:[%s2] sm:$0x1]
    %v61 = vmul.f32 %v50, %v58
    %v62 = vsub.f32 %v60, %v61
    %63 = vst [vmem:[%s4] sm:$0x1] %v62
  $region21: #{common_embedding_forward.4} parent=0 // pred_fallthru
    _
  // Predicated region
  $region22: #{common_embedding_forward.4} parent=0 // pred_check
    _
  $region23: #{common_embedding_forward.4} parent=0 // pred_check_branch
    %65 = sbr.rel (0) target = $region25
  $region24: #{common_embedding_forward.4} parent=0 // pred_region
    _
  $region25: #{common_embedding_forward.4} parent=0 // pred_fallthru
    _
  // Predicated region
  $region26: #{common_embedding_forward.4} parent=0 // pred_check
    _
  $region27: #{common_embedding_forward.4} parent=0 // pred_check_branch
    %67 = sbr.rel (0) target = $region29
  $region28: #{common_embedding_forward.4} parent=0 // pred_region
    _
  $region29: #{common_embedding_forward.4} parent=0 // pred_fallthru
    _
  // Predicated region
  $region30: #{common_embedding_forward.4} parent=0 // pred_check
    _
  $region31: #{common_embedding_forward.4} parent=0 // pred_check_branch
    %69 = sbr.rel (0) target = $region33
  $region32: #{common_embedding_forward.4} parent=0 // pred_region
    _
  $region33: #{common_embedding_forward.4} parent=0 // pred_fallthru
    _
  // Predicated region
  $region34: #{common_embedding_forward.4} parent=0 // pred_check
    _
  $region35: #{common_embedding_forward.4} parent=0 // pred_check_branch
    %71 = sbr.rel (0) target = $region37
  $region36: #{common_embedding_forward.4} parent=0 // pred_region
    _
  $region37: #{common_embedding_forward.4} parent=0 // pred_fallthru
    _

// kernel: common_embedding_forward.6
$region0: #{common_embedding_forward.6}
  #allocation0 [shape = 'u32[]', space=smem, size = 0x4, offset = 0x4, fixed_abs, tag = 'smem constant byte address 0x4 - core index']
  #allocation1 [shape = 'u32[144,128]{1,0:T(1,128)}', space=vmem, size = 0x12000, scoped, tag = 'internal scratch']
  #allocation2 [shape = 'f32[1,128]{1,0:T(1,128)}', space=vmem, size = 0x200, scoped, tag = 'scratch operand']
  #allocation3 [shape = 'f32[1,128]{1,0:T(1,128)}', space=vmem, size = 0x200, scoped, tag = 'scratch operand']
  %s0 = inlined_call_operand.vmem [shape: f32[16,128], index: 0, kind: input, shape index: {}]
  %s1 = inlined_call_operand.vmem [shape: s32[16,1], index: 1, kind: input, shape index: {}]
  %s2 = inlined_call_operand.vmem [shape: f32[128,128], index: 2, kind: input, shape index: {}]
  %s3 = inlined_call_operand.vmem [shape: f32[1,128], index: 3, kind: input, shape index: {}]
  %s4 = inlined_call_operand.vmem [shape: f32[1,128], index: 4, kind: input, shape index: {}]
  %s5 = inlined_call_operand.vmem [shape: f32[16,128], index: 5, kind: output, shape index: {0}]
  %s6 = inlined_call_operand.vmem [shape: f32[1,128], index: 6, kind: output, shape index: {1}]
  %s7 = inlined_call_operand.vmem [shape: f32[1,128], index: 7, kind: output, shape index: {2}]
  %8 = xla_tuple %s5, %s6, %s7
  %s9 = sld [smem:[#allocation0]]
  $region54: #{common_embedding_forward.6} parent=0
    _
  %s11 = ssub.s32 1, %s9
  %s12 = scalar_select 0, %s11, %s9
  // Predicated region
  $region2: #{common_embedding_forward.6} parent=0 // pred_check
    _
  $region3: #{common_embedding_forward.6} parent=0 // pred_check_branch
    %14 = sbr.rel (0) target = $region5
  $region4: #{common_embedding_forward.6} parent=0 // pred_region
    _
  $region5: #{common_embedding_forward.6} parent=0 // pred_fallthru
    _
  // Predicated region
  $region6: #{common_embedding_forward.6} parent=0 // pred_check
    _
  $region7: #{common_embedding_forward.6} parent=0 // pred_check_branch
    %16 = sbr.rel (0) target = $region9
  $region8: #{common_embedding_forward.6} parent=0 // pred_region
    _
  $region9: #{common_embedding_forward.6} parent=0 // pred_fallthru
    _
  // Predicated region
  $region10: #{common_embedding_forward.6} parent=0 // pred_check
    _
  $region11: #{common_embedding_forward.6} parent=0 // pred_check_branch
    %18 = sbr.rel (0) target = $region13
  $region12: #{common_embedding_forward.6} parent=0 // pred_region
    _
  $region13: #{common_embedding_forward.6} parent=0 // pred_fallthru
    _
  // Predicated region
  $region14: #{common_embedding_forward.6} parent=0 // pred_check
    _
  $region15: #{common_embedding_forward.6} parent=0 // pred_check_branch
    %20 = sbr.rel (0) target = $region17
  $region16: #{common_embedding_forward.6} parent=0 // pred_region
    _
  $region17: #{common_embedding_forward.6} parent=0 // pred_fallthru
    _
  // Predicated region
  $region18: #{common_embedding_forward.6} parent=0 // pred_check
    _
  $region19: #{common_embedding_forward.6} parent=0 // pred_check_branch
    %22 = sbr.rel (0) target = $region21
  $region20: #{common_embedding_forward.6} parent=0 // pred_region
    _
  $region21: #{common_embedding_forward.6} parent=0 // pred_fallthru
    _
  %p23 = scmp.eq.s32.totalorder 0, 0
  // Predicated region
  $region22: #{common_embedding_forward.6} parent=0 // pred_check
    %p24 = pneg %p23
  $region23: #{common_embedding_forward.6} parent=0 // pred_check_branch
    %26 = sbr.rel (%p24) target = $region25
  $region24: #{common_embedding_forward.6} parent=0 // pred_region
    %27 = vst [vmem:[#allocation2] sm:$0x1] 0.0
    %28 = vst [vmem:[#allocation3] sm:$0x1] 0.0
  $region25: #{common_embedding_forward.6} parent=0 // pred_fallthru
    _
  %v29 = vld [vmem:[%s0] sm:$0xff]
  %v30 = vld [vmem:[%s0 + $0x8] sm:$0xff]
  %v31 = vld [vmem:[%s1] sm:$0xff]
  %v32 = vld [vmem:[%s1 + $0x8] sm:$0xff]
  %v33 = vlaneseq
  %v34 = vand.u32 %v33, 127
  %35 = vset.pattern.permute.xlu0 0
  %36 = vperm.xlu0 %35, %v31
  %v37 = vpop.permute.xlu0 %36
  %38 = vset.pattern.permute.xlu0 0
  %39 = vperm.xlu0 %38, %v32
  %v40 = vpop.permute.xlu0 %39
  %vm41 = vcmp.eq.s32.totalorder %v37, %v34
  %vm42 = vcmp.eq.s32.totalorder %v40, %v34
  %v43 = vsel %vm41, 1, 0
  %v44 = vsel %vm42, 1, 0
  %v45 = vcvt.s32.f32 %v43
  %v46 = vcvt.s32.f32 %v44
  %v47 = vld [vmem:[%s2] sm:$0xff]
  %v48 = vld [vmem:[%s2 + $0x8] sm:$0xff]
  %v49 = vld [vmem:[%s2 + $0x10] sm:$0xff]
  %v50 = vld [vmem:[%s2 + $0x18] sm:$0xff]
  %v51 = vld [vmem:[%s2 + $0x20] sm:$0xff]
  %v52 = vld [vmem:[%s2 + $0x28] sm:$0xff]
  %v53 = vld [vmem:[%s2 + $0x30] sm:$0xff]
  %v54 = vld [vmem:[%s2 + $0x38] sm:$0xff]
  %v55 = vld [vmem:[%s2 + $0x40] sm:$0xff]
  %v56 = vld [vmem:[%s2 + $0x48] sm:$0xff]
  %v57 = vld [vmem:[%s2 + $0x50] sm:$0xff]
  %v58 = vld [vmem:[%s2 + $0x58] sm:$0xff]
  %v59 = vld [vmem:[%s2 + $0x60] sm:$0xff]
  %v60 = vld [vmem:[%s2 + $0x68] sm:$0xff]
  %v61 = vld [vmem:[%s2 + $0x70] sm:$0xff]
  %v62 = vld [vmem:[%s2 + $0x78] sm:$0xff]
  %63 = vmatprep.subr.mxu0 0.0
  %64 = vmatpush1.msra.mxu0 %v62
  %65 = vmatprep.subr.mxu0 0.0
  %66 = vmatpush1.msra.mxu0 %v61
  %67 = vmatprep.subr.mxu0 0.0
  %68 = vmatpush1.msra.mxu0 %v60
  %69 = vmatprep.subr.mxu0 0.0
  %70 = vmatpush1.msra.mxu0 %v59
  %71 = vmatprep.subr.mxu0 0.0
  %72 = vmatpush1.msra.mxu0 %v58
  %73 = vmatprep.subr.mxu0 0.0
  %74 = vmatpush1.msra.mxu0 %v57
  %75 = vmatprep.subr.mxu0 0.0
  %76 = vmatpush1.msra.mxu0 %v56
  %77 = vmatprep.subr.mxu0 0.0
  %78 = vmatpush1.msra.mxu0 %v55
  %79 = vmatprep.subr.mxu0 0.0
  %80 = vmatpush1.msra.mxu0 %v54
  %81 = vmatprep.subr.mxu0 0.0
  %82 = vmatpush1.msra.mxu0 %v53
  %83 = vmatprep.subr.mxu0 0.0
  %84 = vmatpush1.msra.mxu0 %v52
  %85 = vmatprep.subr.mxu0 0.0
  %86 = vmatpush1.msra.mxu0 %v51
  %87 = vmatprep.subr.mxu0 0.0
  %88 = vmatpush1.msra.mxu0 %v50
  %89 = vmatprep.subr.mxu0 0.0
  %90 = vmatpush1.msra.mxu0 %v49
  %91 = vmatprep.subr.mxu0 0.0
  %92 = vmatpush1.msra.mxu0 %v48
  %93 = vmatprep.subr.mxu0 0.0
  %94 = vmatpush1.msra.mxu0 %v47
  %95 = vmatprep.subr.mxu0 0.0
  %96 = vmatpush2.msra.mxu0 0.0
  %97 = vmatprep.subr.mxu0 0.0
  %98 = vmatpush2.msra.mxu0 0.0
  %99 = vmatprep.subr.mxu0 0.0
  %100 = vmatpush2.msra.mxu0 0.0
  %101 = vmatprep.subr.mxu0 0.0
  %102 = vmatpush2.msra.mxu0 0.0
  %103 = vmatprep.subr.mxu0 0.0
  %104 = vmatpush2.msra.mxu0 0.0
  %105 = vmatprep.subr.mxu0 0.0
  %106 = vmatpush2.msra.mxu0 0.0
  %107 = vmatprep.subr.mxu0 0.0
  %108 = vmatpush2.msra.mxu0 0.0
  %109 = vmatprep.subr.mxu0 0.0
  %110 = vmatpush2.msra.mxu0 0.0
  %111 = vmatprep.subr.mxu0 0.0
  %112 = vmatpush2.msra.mxu0 0.0
  %113 = vmatprep.subr.mxu0 0.0
  %114 = vmatpush2.msra.mxu0 0.0
  %115 = vmatprep.subr.mxu0 0.0
  %116 = vmatpush2.msra.mxu0 0.0
  %117 = vmatprep.subr.mxu0 0.0
  %118 = vmatpush2.msra.mxu0 0.0
  %119 = vmatprep.subr.mxu0 0.0
  %120 = vmatpush2.msra.mxu0 0.0
  %121 = vmatprep.subr.mxu0 0.0
  %122 = vmatpush2.msra.mxu0 0.0
  %123 = vmatprep.subr.mxu0 0.0
  %124 = vmatpush2.msra.mxu0 0.0
  %125 = vmatprep.subr.mxu0 0.0
  %126 = vmatpush2.msra.mxu0 0.0
  %127 = vmatprep.mubr.f32.mxu0 0.0
  %128 = vmatmul.mubr.f32.gmra.mxu0 %v45
  %v129 = vpop.f32.mrf.mxu0
  %v130 = vadd.f32 0.0, %v129
  %v131 = vpop.f32.mrf.mxu0
  %132 = vmatprep.mubr.f32.mxu0 0.0
  %133 = vmatmul.mubr.f32.gmra.mxu0 %v46
  %v134 = vpop.f32.mrf.mxu0
  %v135 = vadd.f32 0.0, %v134
  %v136 = vpop.f32.mrf.mxu0
  %137 = vdwg.mxu0
  %v138 = vadd.f32 %v29, %v130
  %v139 = vadd.f32 %v30, %v135
  %140 = vst [vmem:[%s5] sm:$0xff] %v138
  %141 = vst [vmem:[%s5 + $0x8] sm:$0xff] %v139
  %v142 = vld [vmem:[#allocation2] sm:$0x1]
  %v143 = vadd.f32 %v138, %v139
  %v144 = vrot.slane %v143, 4
  %v145 = vadd.f32 %v143, %v144
  %v146 = vrot.slane %v145, 2
  %v147 = vadd.f32 %v145, %v146
  %v148 = vrot.slane %v147, 1
  %v149 = vadd.f32 %v147, %v148
  %v150 = vadd.f32 %v142, %v149
  %151 = vst [vmem:[#allocation2] sm:$0x1] %v150
  %v152 = vld [vmem:[#allocation3] sm:$0x1]
  %v153 = vmul.f32 %v138, %v138
  %v154 = vmul.f32 %v139, %v139
  %v155 = vadd.f32 %v153, %v154
  %v156 = vrot.slane %v155, 4
  %v157 = vadd.f32 %v155, %v156
  %v158 = vrot.slane %v157, 2
  %v159 = vadd.f32 %v157, %v158
  %v160 = vrot.slane %v159, 1
  %v161 = vadd.f32 %v159, %v160
  %v162 = vadd.f32 %v152, %v161
  %163 = vst [vmem:[#allocation3] sm:$0x1] %v162
  // Predicated region
  $region26: #{common_embedding_forward.6} parent=0 // pred_check
    %p164 = pneg %p23
  $region27: #{common_embedding_forward.6} parent=0 // pred_check_branch
    %166 = sbr.rel (%p164) target = $region29
  $region28: #{common_embedding_forward.6} parent=0 // pred_region
    %v167 = vld [vmem:[#allocation2] sm:$0x1]
    %v168 = vmul.f32 %v167, 0.0625
    %v169 = vld [vmem:[#allocation3] sm:$0x1]
    %v170 = vmul.f32 %v169, 0.0625
    %v171 = vmul.f32 %v168, %v168
    %v172 = vsub.f32 %v170, %v171
    %v173 = vld [vmem:[%s3] sm:$0x1]
    %v174 = vadd.f32 %v172, 1e-05
    %v175 = vrsqrt.pop %v174
    %v176 = vmul.f32 %v173, %v175
    %177 = vst [vmem:[%s6] sm:$0x1] %v176
    %v178 = vld [vmem:[%s4] sm:$0x1]
    %v179 = vmul.f32 %v168, %v176
    %v180 = vsub.f32 %v178, %v179
    %181 = vst [vmem:[%s7] sm:$0x1] %v180
  $region29: #{common_embedding_forward.6} parent=0 // pred_fallthru
    _
  // Predicated region
  $region30: #{common_embedding_forward.6} parent=0 // pred_check
    _
  $region31: #{common_embedding_forward.6} parent=0 // pred_check_branch
    %183 = sbr.rel (0) target = $region33
  $region32: #{common_embedding_forward.6} parent=0 // pred_region
    _
  $region33: #{common_embedding_forward.6} parent=0 // pred_fallthru
    _
  // Predicated region
  $region34: #{common_embedding_forward.6} parent=0 // pred_check
    _
  $region35: #{common_embedding_forward.6} parent=0 // pred_check_branch
    %185 = sbr.rel (0) target = $region37
  $region36: #{common_embedding_forward.6} parent=0 // pred_region
    _
  $region37: #{common_embedding_forward.6} parent=0 // pred_fallthru
    _
  // Predicated region
  $region38: #{common_embedding_forward.6} parent=0 // pred_check
    _
  $region39: #{common_embedding_forward.6} parent=0 // pred_check_branch
    %187 = sbr.rel (0) target = $region41
  $region40: #{common_embedding_forward.6} parent=0 // pred_region
    _
  $region41: #{common_embedding_forward.6} parent=0 // pred_fallthru
    _
  // Predicated region
  $region42: #{common_embedding_forward.6} parent=0 // pred_check
    _
  $region43: #{common_embedding_forward.6} parent=0 // pred_check_branch
    %189 = sbr.rel (0) target = $region45
  $region44: #{common_embedding_forward.6} parent=0 // pred_region
    _
  $region45: #{common_embedding_forward.6} parent=0 // pred_fallthru
    _
  // Predicated region
  $region46: #{common_embedding_forward.6} parent=0 // pred_check
    _
  $region47: #{common_embedding_forward.6} parent=0 // pred_check_branch
    %191 = sbr.rel (0) target = $region49
  $region48: #{common_embedding_forward.6} parent=0 // pred_region
    _
  $region49: #{common_embedding_forward.6} parent=0 // pred_fallthru
    _
  // Predicated region
  $region50: #{common_embedding_forward.6} parent=0 // pred_check
    _
  $region51: #{common_embedding_forward.6} parent=0 // pred_check_branch
    %193 = sbr.rel (0) target = $region53
  $region52: #{common_embedding_forward.6} parent=0 // pred_region
    _
  $region53: #{common_embedding_forward.6} parent=0 // pred_fallthru
    _

// kernel: common_embedding_forward.7
$region0: #{common_embedding_forward.7}
  #allocation0 [shape = 'u32[]', space=smem, size = 0x4, offset = 0x4, fixed_abs, tag = 'smem constant byte address 0x4 - core index']
  #allocation1 [shape = 'u32[144,128]{1,0:T(1,128)}', space=vmem, size = 0x12000, scoped, tag = 'internal scratch']
  %s0 = inlined_call_operand.vmem [shape: f32[16,128], index: 0, kind: input, shape index: {}]
  %s1 = inlined_call_operand.vmem [shape: f32[1,128], index: 1, kind: input, shape index: {}]
  %s2 = inlined_call_operand.vmem [shape: f32[1,128], index: 2, kind: input, shape index: {}]
  %s3 = inlined_call_operand.vmem [shape: bf16[128,128], index: 3, kind: input, shape index: {}]
  %s4 = inlined_call_operand.vmem [shape: f32[1,128], index: 4, kind: input, shape index: {}]
  %s5 = inlined_call_operand.hbm [shape: f32[16,128], index: 5, kind: output, shape index: {}]
  %s6 = sld [smem:[#allocation0]]
  $region30: #{common_embedding_forward.7} parent=0
    _
  %s8 = ssub.s32 1, %s6
  %s9 = scalar_select 0, %s8, %s6
  $region1: #{common_embedding_forward.7} parent=0
    #allocation2 [shape = 'u8[8192]{0}', space=vmem, size = 0x2000, scoped, tag = 'output window, operand 0, single buffered']
    #allocation3 [shape = 's32[1]{0}', space=sflag, size = 0x4, scoped, tag = 'scoped memory for common_embedding_forward.7']
    %10 = vsyncpa [#allocation3], 0
    // Predicated region
    $region2: #{common_embedding_forward.7} parent=1 // pred_check
      _
    $region3: #{common_embedding_forward.7} parent=1 // pred_check_branch
      %12 = sbr.rel (0) target = $region5
    $region4: #{common_embedding_forward.7} parent=1 // pred_region
      _
    $region5: #{common_embedding_forward.7} parent=1 // pred_fallthru
      _
    // Predicated region
    $region6: #{common_embedding_forward.7} parent=1 // pred_check
      _
    $region7: #{common_embedding_forward.7} parent=1 // pred_check_branch
      %14 = sbr.rel (0) target = $region9
    $region8: #{common_embedding_forward.7} parent=1 // pred_region
      _
    $region9: #{common_embedding_forward.7} parent=1 // pred_fallthru
      _
    // Predicated region
    $region10: #{common_embedding_forward.7} parent=1 // pred_check
      _
    $region11: #{common_embedding_forward.7} parent=1 // pred_check_branch
      %16 = sbr.rel (0) target = $region13
    $region12: #{common_embedding_forward.7} parent=1 // pred_region
      _
    $region13: #{common_embedding_forward.7} parent=1 // pred_fallthru
      _
    // Predicated region
    $region14: #{common_embedding_forward.7} parent=1 // pred_check
      _
    $region15: #{common_embedding_forward.7} parent=1 // pred_check_branch
      %18 = sbr.rel (0) target = $region17
    $region16: #{common_embedding_forward.7} parent=1 // pred_region
      _
    $region17: #{common_embedding_forward.7} parent=1 // pred_fallthru
      _
    // Predicated region
    $region18: #{common_embedding_forward.7} parent=1 // pred_check
      _
    $region19: #{common_embedding_forward.7} parent=1 // pred_check_branch
      %20 = sbr.rel (0) target = $region21
    $region20: #{common_embedding_forward.7} parent=1 // pred_region
      _
    $region21: #{common_embedding_forward.7} parent=1 // pred_fallthru
      _
    %v22 = vld [vmem:[%s0] sm:$0xff]
    %v23 = vld [vmem:[%s0 + $0x8] sm:$0xff]
    %v24 = vld [vmem:[%s1] sm:$0x1]
    %v26 = vlaneseq
    %v27 = vshrl.u32 %v26, 7
    %v28 = vsub.s32 0, %v27
    %v29 = vrot.slane %v24, %v28
    %v31 = vmul.f32 %v22, %v29
    %v32 = vmul.f32 %v23, %v29
    %v33 = vld [vmem:[%s2] sm:$0x1]
    %v35 = vlaneseq
    %v36 = vshrl.u32 %v35, 7
    %v37 = vsub.s32 0, %v36
    %v38 = vrot.slane %v33, %v37
    %v40 = vadd.f32 %v31, %v38
    %v41 = vadd.f32 %v32, %v38
    %v42 = vpack.c.bf16 %v41, %v40
    %v43 = vld [vmem:[%s3] sm:$0xf]
    %v44 = vld [vmem:[%s3 + $0x4] sm:$0xf]
    %v45 = vld [vmem:[%s3 + $0x8] sm:$0xf]
    %v46 = vld [vmem:[%s3 + $0xc] sm:$0xf]
    %v47 = vld [vmem:[%s3 + $0x10] sm:$0xf]
    %v48 = vld [vmem:[%s3 + $0x14] sm:$0xf]
    %v49 = vld [vmem:[%s3 + $0x18] sm:$0xf]
    %v50 = vld [vmem:[%s3 + $0x1c] sm:$0xf]
    %v51 = vld [vmem:[%s3 + $0x20] sm:$0xf]
    %v52 = vld [vmem:[%s3 + $0x24] sm:$0xf]
    %v53 = vld [vmem:[%s3 + $0x28] sm:$0xf]
    %v54 = vld [vmem:[%s3 + $0x2c] sm:$0xf]
    %v55 = vld [vmem:[%s3 + $0x30] sm:$0xf]
    %v56 = vld [vmem:[%s3 + $0x34] sm:$0xf]
    %v57 = vld [vmem:[%s3 + $0x38] sm:$0xf]
    %v58 = vld [vmem:[%s3 + $0x3c] sm:$0xf]
    %v59 = vld [vmem:[%s4] sm:$0x1]
    %v61 = vlaneseq
    %v62 = vshrl.u32 %v61, 7
    %v63 = vsub.s32 0, %v62
    %v64 = vrot.slane %v59, %v63
    %v82 = vunpack.c.l.b16 %v43
    %v83 = vunpack.c.l.b16 %v44
    %v84 = vunpack.c.l.b16 %v45
    %v85 = vunpack.c.l.b16 %v46
    %v86 = vunpack.c.l.b16 %v47
    %v87 = vunpack.c.l.b16 %v48
    %v88 = vunpack.c.l.b16 %v49
    %v89 = vunpack.c.l.b16 %v50
    %v90 = vunpack.c.l.b16 %v51
    %v91 = vunpack.c.l.b16 %v52
    %v92 = vunpack.c.l.b16 %v53
    %v93 = vunpack.c.l.b16 %v54
    %v94 = vunpack.c.l.b16 %v55
    %v95 = vunpack.c.l.b16 %v56
    %v96 = vunpack.c.l.b16 %v57
    %v97 = vunpack.c.l.b16 %v58
    %v98 = vpack.c.b16 %v83, %v82
    %v99 = vpack.c.b16 %v85, %v84
    %v100 = vpack.c.b16 %v87, %v86
    %v101 = vpack.c.b16 %v89, %v88
    %v102 = vpack.c.b16 %v91, %v90
    %v103 = vpack.c.b16 %v93, %v92
    %v104 = vpack.c.b16 %v95, %v94
    %v105 = vpack.c.b16 %v97, %v96
    %114 = vmatprep.subr.bf16.mxu0 0
    %115 = vmatpush1.bf16.msra.mxu0 %v105
    %116 = vmatprep.subr.bf16.mxu0 0
    %117 = vmatpush1.bf16.msra.mxu0 %v104
    %118 = vmatprep.subr.bf16.mxu0 0
    %119 = vmatpush1.bf16.msra.mxu0 %v103
    %120 = vmatprep.subr.bf16.mxu0 0
    %121 = vmatpush1.bf16.msra.mxu0 %v102
    %122 = vmatprep.subr.bf16.mxu0 0
    %123 = vmatpush1.bf16.msra.mxu0 %v101
    %124 = vmatprep.subr.bf16.mxu0 0
    %125 = vmatpush1.bf16.msra.mxu0 %v100
    %126 = vmatprep.subr.bf16.mxu0 0
    %127 = vmatpush1.bf16.msra.mxu0 %v99
    %128 = vmatprep.subr.bf16.mxu0 0
    %129 = vmatpush1.bf16.msra.mxu0 %v98
    %130 = vmatprep.subr.bf16.mxu0 0
    %131 = vmatpush2.bf16.msra.mxu0 0
    %132 = vmatprep.subr.bf16.mxu0 0
    %133 = vmatpush2.bf16.msra.mxu0 0
    %134 = vmatprep.subr.bf16.mxu0 0
    %135 = vmatpush2.bf16.msra.mxu0 0
    %136 = vmatprep.subr.bf16.mxu0 0
    %137 = vmatpush2.bf16.msra.mxu0 0
    %138 = vmatprep.subr.bf16.mxu0 0
    %139 = vmatpush2.bf16.msra.mxu0 0
    %140 = vmatprep.subr.bf16.mxu0 0
    %141 = vmatpush2.bf16.msra.mxu0 0
    %142 = vmatprep.subr.bf16.mxu0 0
    %143 = vmatpush2.bf16.msra.mxu0 0
    %144 = vmatprep.subr.bf16.mxu0 0
    %145 = vmatpush2.bf16.msra.mxu0 0
    %146 = vmatprep.mubr.bf16.mxu0 0
    %147 = vmatmul.mubr.bf16.gmra.mxu0 %v42
    %v148 = vpop.f32.mrf.mxu0
    %v149 = vadd.f32 %v64, %v148
    %v150 = vpop.f32.mrf.mxu0
    %v151 = vpop.f32.mrf.mxu0
    %v152 = vadd.f32 %v64, %v151
    %v153 = vpop.f32.mrf.mxu0
    %154 = vdwg.mxu0
    %v155 = vmul.f32 %v149, 0.5
    %v156 = vmul.f32 %v152, 0.5
    %v157 = vmul.f32 %v149, 0.70710677
    %v158 = vmul.f32 %v152, 0.70710677
    %v159 = verf.f32.pop %v157
    %v160 = verf.f32.pop %v158
    %v161 = vadd.f32 %v159, 1.0
    %v162 = vadd.f32 %v160, 1.0
    %v163 = vmul.f32 %v155, %v161
    %v164 = vmul.f32 %v156, %v162
    %165 = vst [vmem:[#allocation2] sm:$0xff] %v163
    %166 = vst [vmem:[#allocation2 + $0x8] sm:$0xff] %v164
    // Predicated region
    $region22: #{common_embedding_forward.7} parent=1 // pred_check
      _
    $region23: #{common_embedding_forward.7} parent=1 // pred_check_branch
      %168 = sbr.rel (0) target = $region25
    $region24: #{common_embedding_forward.7} parent=1 // pred_region
      %s170 = ssub.s32 256, 256
      %171 = vsyncadd [#allocation3], %s170
      %s172 = sshll.u32 [#allocation2], 4
      %s173 = int_to_ptr.vmem [resolvable:$true] %s172
      %178 = dma.vmem_to_hbm [thread:$0]  %s173, 256, %s5, [#allocation3], 128, 128, 8
    $region25: #{common_embedding_forward.7} parent=1 // pred_fallthru
      _
    // Predicated region
    $region26: #{common_embedding_forward.7} parent=1 // pred_check
      _
    $region27: #{common_embedding_forward.7} parent=1 // pred_check_branch
      %180 = sbr.rel (0) target = $region29
    $region28: #{common_embedding_forward.7} parent=1 // pred_region
      %181 = dma.done [#allocation3], 256
    $region29: #{common_embedding_forward.7} parent=1 // pred_fallthru
      _
    %182 = vsyncpa [#allocation3], 1

</llo_original>
